<compile_context>
chip_gen: v7x
topology: tpu7x:2x2x1
jax: 0.10.0
libtpu: 0.0.40
codegen_flags: <defaults>
</compile_context>

<pallas_src>
import functools

import jax
import jax.numpy as jnp
from jax import lax
from jax.experimental import pallas as pl
from jax.experimental.pallas import tpu as pltpu


_LANE = 128
_DEFAULT_TILE_BYTES = 2 << 20   # ~2 MiB per (M, TK) buffer (~4 MiB double-buffered)
_SAFE_VMEM_BYTES = 48 << 20     # stay well under v7x's 64 MiB physical VMEM per TC
_VMEM_MARGIN = 8 << 20          # headroom for Mosaic internal scratch


# ---------------------------------------------------------------------------
# helpers
# ---------------------------------------------------------------------------
def _features(x, compute_dtype=None):
    """NCHW -> (M, K) feature matrix (torch .view layout), no padding copy."""
    a, b, c, d = x.shape
    f = x.reshape(a * b, c * d)
    if compute_dtype is not None:
        f = f.astype(compute_dtype)     # optional bf16 path: halves HBM reads
    return f, a * b, c * d, float(a * b * c * d)


def _choose_tk(m_rows, K, itemsize, tile_bytes=_DEFAULT_TILE_BYTES):
    """K tile from a per-buffer VMEM byte budget.

    Returns either a lane-aligned (multiple-of-128) tile -- the ragged final
    tile is masked in-kernel -- or the full un-padded K when a single tile
    covers it (block dim == array dim is legal even if K % 128 != 0)."""
    tk = (tile_bytes // max(m_rows * itemsize, 1)) // _LANE * _LANE
    tk = max(tk, _LANE)
    return K if K <= tk else tk


def _vmem_limit(bytes_needed):
    """Actual need + margin (not a fixed clamp), capped under v7x's 64 MiB."""
    return int(min(bytes_needed + _VMEM_MARGIN, 56 << 20))


def _plan_resident(M, K, itemsize, n_mm_bufs, tile_bytes):
    """(TK, vmem_limit) for the resident-(M, M) path, or None if the resident
    gram cannot fit VMEM (caller falls back to the M-tiled kernel)."""
    mm_bytes = n_mm_bufs * M * M * 4
    tile_budget = _SAFE_VMEM_BYTES - _VMEM_MARGIN - mm_bytes
    if tile_budget < 2 * M * _LANE * itemsize:
        return None
    tk = _choose_tk(M, K, itemsize, min(tile_bytes, tile_budget // 2))
    need = 2 * M * tk * itemsize + mm_bytes
    return tk, _vmem_limit(need)


def _mask_k_tail(f, k_idx, num_k, tk, k_rem):
    """Zero the lanes past K on the ragged final K tile (no-op when aligned)."""
    if k_rem == 0:
        return f
    col = lax.broadcasted_iota(jnp.int32, f.shape, dimension=f.ndim - 1)
    limit = jnp.where(k_idx == num_k - 1, k_rem, tk)
    return jnp.where(col < limit, f, jnp.zeros_like(f))


# ---------------------------------------------------------------------------
# kernels
# ---------------------------------------------------------------------------
def _gram_kernel(f_ref, g_ref, *, inv_norm, tk, k_rem):
    """Resident (M, M) gram: accumulate F F^T over K tiles directly into the
    resident f32 output; scale by 1/(a*b*c*d) on the final step."""
    k = pl.program_id(0)
    nk = pl.num_programs(0)

    @pl.when(k == 0)
    def _():
        g_ref[...] = jnp.zeros_like(g_ref)

    f = _mask_k_tail(f_ref[...], k, nk, tk, k_rem)
    g_ref[...] += lax.dot_general(
        f, f, dimension_numbers=(((1,), (1,)), ((), ())),
        preferred_element_type=jnp.float32)

    @pl.when(k == nk - 1)
    def _():
        g_ref[...] = g_ref[...] * inv_norm


def _gram_mse_kernel(f_ref, t_ref, loss_ref, acc_ref, *, inv_norm, inv_count,
                     tk, k_rem):
    """Fused forward: gram accumulation into VMEM scratch + MSE against the
    resident target gram; only the scalar loss (SMEM) leaves the kernel."""
    k = pl.program_id(0)
    nk = pl.num_programs(0)

    @pl.when(k == 0)
    def _():
        acc_ref[...] = jnp.zeros_like(acc_ref)

    f = _mask_k_tail(f_ref[...], k, nk, tk, k_rem)
    acc_ref[...] += lax.dot_general(
        f, f, dimension_numbers=(((1,), (1,)), ((), ())),
        preferred_element_type=jnp.float32)

    @pl.when(k == nk - 1)
    def _():
        diff = acc_ref[...] * inv_norm - t_ref[...]
        loss_ref[0, 0] = jnp.sum(diff * diff) * inv_count


def _gram_tiled_kernel(fi_ref, fj_ref, g_ref, *, inv_norm, tk, k_rem):
    """Large-M fallback: (TM, TM) output tiles accumulated in the resident
    output block across the trailing K axis."""
    k = pl.program_id(2)
    nk = pl.num_programs(2)

    @pl.when(k == 0)
    def _():
        g_ref[...] = jnp.zeros_like(g_ref)

    fi = _mask_k_tail(fi_ref[...], k, nk, tk, k_rem)
    fj = _mask_k_tail(fj_ref[...], k, nk, tk, k_rem)
    g_ref[...] += lax.dot_general(
        fi, fj, dimension_numbers=(((1,), (1,)), ((), ())),
        preferred_element_type=jnp.float32)

    @pl.when(k == nk - 1)
    def _():
        g_ref[...] = g_ref[...] * inv_norm


# ---------------------------------------------------------------------------
# wrappers
# ---------------------------------------------------------------------------
def _gram_tiled(f, M, K, inv_norm, tm=128, tile_bytes=_DEFAULT_TILE_BYTES):
    itemsize = f.dtype.itemsize
    tm = min(tm, M)
    tk = _choose_tk(tm, K, itemsize, tile_bytes)
    ni = -(-M // tm)
    nk = -(-K // tk)
    kernel = functools.partial(_gram_tiled_kernel, inv_norm=inv_norm,
                               tk=tk, k_rem=K % tk)
    need = 4 * tm * tk * itemsize + 2 * tm * tm * 4
    return pl.pallas_call(
        kernel,
        out_shape=jax.ShapeDtypeStruct((M, M), jnp.float32),
        grid_spec=pltpu.PrefetchScalarGridSpec(
            num_scalar_prefetch=0,
            grid=(ni, ni, nk),
            in_specs=[pl.BlockSpec((tm, tk), lambda i, j, k: (i, k)),
                      pl.BlockSpec((tm, tk), lambda i, j, k: (j, k))],
            out_specs=pl.BlockSpec((tm, tm), lambda i, j, k: (i, j)),
        ),
        compiler_params=pltpu.CompilerParams(
            dimension_semantics=("parallel", "parallel", "arbitrary"),
            vmem_limit_bytes=_vmem_limit(need),
        ),
    )(f, f)


def gram_matrix(x, compute_dtype=None, tile_bytes=_DEFAULT_TILE_BYTES,
                force_tiled=False):
    """x: (a, b, c, d) NCHW.  Returns (a*b, a*b) f32 gram = F F^T / (a*b*c*d)."""
    f, M, K, norm = _features(x, compute_dtype)
    inv_norm = 1.0 / norm
    itemsize = f.dtype.itemsize
    plan = None if force_tiled else _plan_resident(M, K, itemsize, 2, tile_bytes)
    if plan is None:
        # Resident (M, M) gram would overflow v7x's 64 MiB/TC VMEM.
        return _gram_tiled(f, M, K, inv_norm, tile_bytes=tile_bytes)
    tk, vmem_bytes = plan
    nk = -(-K // tk)
    kernel = functools.partial(_gram_kernel, inv_norm=inv_norm, tk=tk,
                               k_rem=K % tk)
    return pl.pallas_call(
        kernel,
        out_shape=jax.ShapeDtypeStruct((M, M), jnp.float32),
        grid_spec=pltpu.PrefetchScalarGridSpec(
            num_scalar_prefetch=0,
            grid=(nk,),
            in_specs=[pl.BlockSpec((M, tk), lambda k: (0, k))],
            out_specs=pl.BlockSpec((M, M), lambda k: (0, 0)),
        ),
        compiler_params=pltpu.CompilerParams(
            dimension_semantics=("arbitrary",),
            vmem_limit_bytes=vmem_bytes,
        ),
    )(f)


def style_loss(x, target_gram, compute_dtype=None,
               tile_bytes=_DEFAULT_TILE_BYTES, force_tiled=False):
    """loss = mean((gram_matrix(x) - target_gram)^2).  Single fused launch
    when the (M, M) gram fits VMEM, else M-tiled gram kernel + tiny XLA MSE."""
    f, M, K, norm = _features(x, compute_dtype)
    inv_norm = 1.0 / norm
    inv_count = 1.0 / float(M * M)
    itemsize = f.dtype.itemsize
    plan = None if force_tiled else _plan_resident(M, K, itemsize, 3, tile_bytes)
    if plan is None:
        # Large-M fallback: the MSE epilogue only touches 2*M*M*4 bytes,
        # trivial next to streaming F.
        g = _gram_tiled(f, M, K, inv_norm, tile_bytes=tile_bytes)
        return jnp.mean((g - target_gram) ** 2)
    tk, vmem_bytes = plan
    nk = -(-K // tk)
    kernel = functools.partial(_gram_mse_kernel, inv_norm=inv_norm,
                               inv_count=inv_count, tk=tk, k_rem=K % tk)
    loss = pl.pallas_call(
        kernel,
        out_shape=jax.ShapeDtypeStruct((1, 1), jnp.float32),
        grid_spec=pltpu.PrefetchScalarGridSpec(
            num_scalar_prefetch=0,
            grid=(nk,),
            in_specs=[
                pl.BlockSpec((M, tk), lambda k: (0, k)),   # streamed F tiles
                pl.BlockSpec((M, M), lambda k: (0, 0)),    # resident target gram
            ],
            out_specs=pl.BlockSpec(memory_space=pltpu.MemorySpace.SMEM),
            scratch_shapes=[pltpu.VMEM((M, M), jnp.float32)],
        ),
        compiler_params=pltpu.CompilerParams(
            dimension_semantics=("arbitrary",),
            vmem_limit_bytes=vmem_bytes,
        ),
    )(f, target_gram)
    return loss[0, 0]


# ---------------------------------------------------------------------------
# StyleLoss module equivalent.
# ---------------------------------------------------------------------------
class StyleLoss:
    def __init__(self, target_feature, compute_dtype=None):
        self.compute_dtype = compute_dtype
        # target gram is precomputed (detached) at construction time.
        self.target = gram_matrix(target_feature, compute_dtype=compute_dtype)
        self.loss = None

    def forward(self, x):
        self.loss = style_loss(x, self.target, compute_dtype=self.compute_dtype)
        return x  # module is a pass-through, like the PyTorch version


if __name__ == "__main__":
    def gram_ref(t):
        A, B, C, D = t.shape
        ff = t.reshape(A * B, C * D).astype(jnp.float32)
        return (ff @ ff.T) / (A * B * C * D)

    def loss_ref_fn(xx, tt):
        return jnp.mean((gram_ref(xx) - gram_ref(tt)) ** 2)

    key = jax.random.PRNGKey(0)
    k_tgt, k_in, k3, k4, k5, k6 = jax.random.split(key, 6)

    # 1) main case: (2, 4, 16, 16) NCHW, lane-aligned K = 256, fused path.
    a, b, c, d = 2, 4, 16, 16
    target_feature = jax.random.normal(k_tgt, (a, b, c, d), dtype=jnp.float32)
    x = jax.random.normal(k_in, (a, b, c, d), dtype=jnp.float32)

    module = StyleLoss(target_feature)
    out = module.forward(x)
    out = jax.block_until_ready(out)
    loss = jax.block_until_ready(module.loss)

    assert jnp.array_equal(out, x)
    assert jnp.allclose(module.target, gram_ref(target_feature), rtol=1e-5, atol=1e-5)
    assert jnp.allclose(loss, loss_ref_fn(x, target_feature), rtol=1e-5, atol=1e-5)

    # 2) ragged K (c*d = 196, not a multiple of 128), no padding copy:
    #    a) default plan -> single full-width un-padded K block
    #    b) tiny tile budget -> multi-tile grid exercising the in-kernel tail mask
    tf2 = jax.random.normal(k3, (2, 6, 14, 14), dtype=jnp.float32)
    x2 = jax.random.normal(k4, (2, 6, 14, 14), dtype=jnp.float32)
    m2 = StyleLoss(tf2)
    m2.forward(x2)
    assert jnp.allclose(jax.block_until_ready(m2.loss), loss_ref_fn(x2, tf2),
                        rtol=1e-5, atol=1e-5)
    t2 = gram_matrix(tf2, tile_bytes=8192)
    l2 = style_loss(x2, t2, tile_bytes=8192)
    assert jnp.allclose(jax.block_until_ready(t2), gram_ref(tf2), rtol=1e-5, atol=1e-5)
    assert jnp.allclose(jax.block_until_ready(l2), loss_ref_fn(x2, tf2),
                        rtol=1e-5, atol=1e-5)

    # 3) M-tiled fallback (chosen automatically when the resident (M, M) gram
    #    would overflow VMEM); forced here on a small ragged-M / ragged-K case.
    tf3 = jax.random.normal(k5, (3, 50, 8, 8), dtype=jnp.float32)
    x3 = jax.random.normal(k6, (3, 50, 8, 8), dtype=jnp.float32)
    t3 = jax.block_until_ready(gram_matrix(tf3, force_tiled=True))
    l3 = jax.block_until_ready(style_loss(x3, t3, force_tiled=True))
    assert jnp.allclose(t3, gram_ref(tf3), rtol=1e-5, atol=1e-5)
    assert jnp.allclose(l3, loss_ref_fn(x3, tf3), rtol=1e-5, atol=1e-5)

    # 4) optional bf16 feature path (halves HBM reads; f32 accumulation).
    m4 = StyleLoss(target_feature, compute_dtype=jnp.bfloat16)
    m4.forward(x)
    ref_bf16 = loss_ref_fn(x.astype(jnp.bfloat16),
                           target_feature.astype(jnp.bfloat16))
    assert jnp.allclose(jax.block_until_ready(m4.loss), ref_bf16,
                        rtol=1e-2, atol=1e-6)

    print("KERNEL_OK")
</pallas_src>

<mosaic_0001>
module attributes {stable_mosaic.version = 11 : i64} {
  func.func @_gram_kernel(%arg0: i32, %arg1: memref<8x256xf32, #tpu.memory_space<vmem>>, %arg2: memref<8x8xf32, #tpu.memory_space<vmem>>) attributes {dimension_semantics = [#tpu.dimension_semantics<arbitrary>], iteration_bounds = array<i64: 1>, scalar_prefetch = 0 : i64, scratch_operands = 0 : i64, tpu.core_type = #tpu.core_type<tc>, window_params = [{transform_indices = @transform_0, window_bounds = array<i64: 8, 256>}, {pipeline_mode = #tpu.pipeline_mode<synchronous>, transform_indices = @transform_1, window_bounds = array<i64: 8, 8>}]} {
    %c0_i32 = arith.constant 0 : i32
    %0 = arith.cmpi eq, %arg0, %c0_i32 : i32
    %1 = arith.extui %0 : i1 to i32
    %c0_i32_0 = arith.constant 0 : i32
    %2 = arith.cmpi ne, %1, %c0_i32_0 : i32
    scf.if %2 {
      %cst_8 = arith.constant 0.000000e+00 : f32
      %11 = vector.broadcast %cst_8 : f32 to vector<8x8xf32>
      %c0_9 = arith.constant 0 : index
      %c0_10 = arith.constant 0 : index
      %12 = vector.load %arg2[%c0_9, %c0_10] : memref<8x8xf32, #tpu.memory_space<vmem>>, vector<8x8xf32>
      tpu.vector_store %arg2[%c0_9, %c0_10], %11 {strides = array<i32>} : memref<8x8xf32, #tpu.memory_space<vmem>>, vector<8x8xf32>,
    } else {
    }
    %c0 = arith.constant 0 : index
    %c0_1 = arith.constant 0 : index
    %3 = vector.load %arg1[%c0, %c0_1] : memref<8x256xf32, #tpu.memory_space<vmem>>, vector<8x256xf32>
    %c0_2 = arith.constant 0 : index
    %c0_3 = arith.constant 0 : index
    %4 = vector.load %arg2[%c0_2, %c0_3] : memref<8x8xf32, #tpu.memory_space<vmem>>, vector<8x8xf32>
    %cst = arith.constant dense<0.000000e+00> : vector<8x8xf32>
    %5 = tpu.matmul %3, %3, %cst {dimension_numbers = #tpu.dot_dimension_numbers<[1], [1], [0], [0], [0, 0, 1, 0], [], []>} : vector<8x256xf32>, vector<8x256xf32>, vector<8x8xf32> -> vector<8x8xf32>
    %6 = arith.addf %4, %5 : vector<8x8xf32>
    %c0_4 = arith.constant 0 : index
    %c0_5 = arith.constant 0 : index
    %7 = vector.load %arg2[%c0_4, %c0_5] : memref<8x8xf32, #tpu.memory_space<vmem>>, vector<8x8xf32>
    tpu.vector_store %arg2[%c0_4, %c0_5], %6 {strides = array<i32>} : memref<8x8xf32, #tpu.memory_space<vmem>>, vector<8x8xf32>,
    %c0_i32_6 = arith.constant 0 : i32
    %8 = arith.cmpi eq, %arg0, %c0_i32_6 : i32
    %9 = arith.extui %8 : i1 to i32
    %c0_i32_7 = arith.constant 0 : i32
    %10 = arith.cmpi ne, %9, %c0_i32_7 : i32
    scf.if %10 {
      %c0_8 = arith.constant 0 : index
      %c0_9 = arith.constant 0 : index
      %11 = vector.load %arg2[%c0_8, %c0_9] : memref<8x8xf32, #tpu.memory_space<vmem>>, vector<8x8xf32>
      %cst_10 = arith.constant 4.8828125E-4 : f32
      %12 = vector.broadcast %cst_10 : f32 to vector<8x8xf32>
      %13 = arith.mulf %11, %12 : vector<8x8xf32>
      %c0_11 = arith.constant 0 : index
      %c0_12 = arith.constant 0 : index
      %14 = vector.load %arg2[%c0_11, %c0_12] : memref<8x8xf32, #tpu.memory_space<vmem>>, vector<8x8xf32>
      tpu.vector_store %arg2[%c0_11, %c0_12], %13 {strides = array<i32>} : memref<8x8xf32, #tpu.memory_space<vmem>>, vector<8x8xf32>,
    } else {
    }
    return
  }
  func.func @transform_0(%arg0: i32) -> (i32, i32) {
    %c0_i32 = arith.constant 0 : i32
    %c0_i32_0 = arith.constant 0 : i32
    return %c0_i32, %arg0 : i32, i32
  }
  func.func @transform_1(%arg0: i32) -> (i32, i32) {
    %c0_i32 = arith.constant 0 : i32
    %c0_i32_0 = arith.constant 0 : i32
    %c0_i32_1 = arith.constant 0 : i32
    return %c0_i32, %c0_i32_0 : i32, i32
  }
}

</mosaic_0001>

<llo_original>
// kernel: tpu_custom_call.1
$region0: #{tpu_custom_call.1}
  #allocation0 [shape = 'u32[]', space=smem, size = 0x4, offset = 0x4, fixed_abs, tag = 'smem constant byte address 0x4 - core index']
  #allocation1 [shape = 'u32[144,128]{1,0:T(1,128)}', space=vmem, size = 0x12000, scoped, tag = 'internal scratch']
  %s0 = inlined_call_operand.hbm [shape: f32[8,256], index: 0, kind: input, shape index: {}]
  %s1 = inlined_call_operand.hbm [shape: f32[8,8], index: 1, kind: output, shape index: {}]
  %s2 = sld [smem:[#allocation0]]
  $region26: #{tpu_custom_call.1} parent=0
    _
  %s4 = ssub.s32 1, %s2
  %s5 = scalar_select 0, %s4, %s2
  $region1: #{tpu_custom_call.1} parent=0
    #allocation2 [shape = 'u8[8192]{0}', space=vmem, size = 0x2000, scoped, tag = 'input window, operand 0, single buffered']
    #allocation3 [shape = 's32[1]{0}', space=sflag, size = 0x4, scoped, tag = 'scoped memory for tpu_custom_call.1']
    #allocation4 [shape = 's32[1]{0}', space=sflag, size = 0x4, scoped, tag = 'scoped memory for tpu_custom_call.1']
    #allocation5 [shape = 'u8[4096]{0}', space=vmem, size = 0x1000, scoped, tag = 'output window, operand 0, single buffered']
    %6 = vsyncpa [#allocation3], 0
    %7 = vsyncpa [#allocation4], 0
    // Predicated region
    $region2: #{tpu_custom_call.1} parent=1 // pred_check
      _
    $region3: #{tpu_custom_call.1} parent=1 // pred_check_branch
      %9 = sbr.rel (0) target = $region5
    $region4: #{tpu_custom_call.1} parent=1 // pred_region
      %s11 = ssub.s32 256, 256
      %12 = vsyncadd [#allocation3], %s11
      %s14 = sshll.u32 [#allocation2], 4
      %s15 = int_to_ptr.vmem [resolvable:$true] %s14
      %17 = dma.hbm_to_vmem [thread:$0]  %s0, 256, %s15, [#allocation3]
    $region5: #{tpu_custom_call.1} parent=1 // pred_fallthru
      _
    // Predicated region
    $region6: #{tpu_custom_call.1} parent=1 // pred_check
      _
    $region7: #{tpu_custom_call.1} parent=1 // pred_check_branch
      %19 = sbr.rel (0) target = $region9
    $region8: #{tpu_custom_call.1} parent=1 // pred_region
      %20 = dma.done [#allocation3], 256
    $region9: #{tpu_custom_call.1} parent=1 // pred_fallthru
      _
    %p21 = scmp.eq.s32.totalorder 0, 0
    // Predicated region
    $region10: #{tpu_custom_call.1} parent=1 // pred_check
      %p22 = pneg %p21
    $region11: #{tpu_custom_call.1} parent=1 // pred_check_branch
      %24 = sbr.rel (%p22) target = $region13
    $region12: #{tpu_custom_call.1} parent=1 // pred_region
      %vm25 = vcmask 64512
      %26 = vst.msk [vmem:[#allocation5] sm:$0xff] %vm25, 0.0
    $region13: #{tpu_custom_call.1} parent=1 // pred_fallthru
      _
    %v27 = vld [vmem:[#allocation2] sm:$0xff]
    %v28 = vld [vmem:[#allocation2 + $0x8] sm:$0xff]
    %v29 = vld [vmem:[#allocation5] sm:$0xff]
    %30 = vmatprep.subr.mxu0 %v28
    %31 = vmatpush1.xpose.msra.mxu0 %v27
    %32 = vmatprep.subr.mxu0 0.0
    %33 = vmatpush1.xpose.msra.mxu0 0.0
    %34 = vmatprep.subr.mxu0 0.0
    %35 = vmatpush1.xpose.msra.mxu0 0.0
    %36 = vmatprep.subr.mxu0 0.0
    %37 = vmatpush1.xpose.msra.mxu0 0.0
    %38 = vmatprep.subr.mxu0 0.0
    %39 = vmatpush1.xpose.msra.mxu0 0.0
    %40 = vmatprep.subr.mxu0 0.0
    %41 = vmatpush1.xpose.msra.mxu0 0.0
    %42 = vmatprep.subr.mxu0 0.0
    %43 = vmatpush1.xpose.msra.mxu0 0.0
    %44 = vmatprep.subr.mxu0 0.0
    %45 = vmatpush1.xpose.msra.mxu0 0.0
    %46 = vmatprep.subr.mxu0 0.0
    %47 = vmatpush1.xpose.msra.mxu0 0.0
    %48 = vmatprep.subr.mxu0 0.0
    %49 = vmatpush1.xpose.msra.mxu0 0.0
    %50 = vmatprep.subr.mxu0 0.0
    %51 = vmatpush1.xpose.msra.mxu0 0.0
    %52 = vmatprep.subr.mxu0 0.0
    %53 = vmatpush1.xpose.msra.mxu0 0.0
    %54 = vmatprep.subr.mxu0 0.0
    %55 = vmatpush1.xpose.msra.mxu0 0.0
    %56 = vmatprep.subr.mxu0 0.0
    %57 = vmatpush1.xpose.msra.mxu0 0.0
    %58 = vmatprep.subr.mxu0 0.0
    %59 = vmatpush1.xpose.msra.mxu0 0.0
    %60 = vmatprep.subr.mxu0 0.0
    %61 = vmatpush1.xpose.msra.mxu0 0.0
    %62 = vmatprep.subr.mxu0 0.0
    %63 = vmatpush1.xpose.msra.mxu0 0.0
    %64 = vmatprep.subr.mxu0 0.0
    %65 = vmatpush1.xpose.msra.mxu0 0.0
    %66 = vmatprep.subr.mxu0 0.0
    %67 = vmatpush1.xpose.msra.mxu0 0.0
    %68 = vmatprep.subr.mxu0 0.0
    %69 = vmatpush1.xpose.msra.mxu0 0.0
    %70 = vmatprep.subr.mxu0 0.0
    %71 = vmatpush1.xpose.msra.mxu0 0.0
    %72 = vmatprep.subr.mxu0 0.0
    %73 = vmatpush1.xpose.msra.mxu0 0.0
    %74 = vmatprep.subr.mxu0 0.0
    %75 = vmatpush1.xpose.msra.mxu0 0.0
    %76 = vmatprep.subr.mxu0 0.0
    %77 = vmatpush1.xpose.msra.mxu0 0.0
    %78 = vmatprep.subr.mxu0 0.0
    %79 = vmatpush1.xpose.msra.mxu0 0.0
    %80 = vmatprep.subr.mxu0 0.0
    %81 = vmatpush1.xpose.msra.mxu0 0.0
    %82 = vmatprep.subr.mxu0 0.0
    %83 = vmatpush1.xpose.msra.mxu0 0.0
    %84 = vmatprep.subr.mxu0 0.0
    %85 = vmatpush1.xpose.msra.mxu0 0.0
    %86 = vmatprep.subr.mxu0 0.0
    %87 = vmatpush1.xpose.msra.mxu0 0.0
    %88 = vmatprep.subr.mxu0 0.0
    %89 = vmatpush1.xpose.msra.mxu0 0.0
    %90 = vmatprep.subr.mxu0 0.0
    %91 = vmatpush1.xpose.msra.mxu0 0.0
    %92 = vmatprep.subr.mxu0 0.0
    %93 = vmatpush1.xpose.msra.mxu0 0.0
    %94 = vmatprep.mubr.f32.mxu0 %v28
    %95 = vmatmul.mubr.f32.gmra.mrb[0].mxu0 %v27
    %v96 = vpop.f32.mrb[0].mxu0
    %v97 = vadd.f32 0.0, %v96
    %v98 = vpop.f32.mrb[0].mxu0
    %99 = vdwg.mxu0
    %v100 = vadd.f32 %v29, %v97
    %vm101 = vcmask 64512
    %102 = vst.msk [vmem:[#allocation5] sm:$0xff] %vm101, %v100
    // Predicated region
    $region14: #{tpu_custom_call.1} parent=1 // pred_check
      %p103 = pneg %p21
    $region15: #{tpu_custom_call.1} parent=1 // pred_check_branch
      %105 = sbr.rel (%p103) target = $region17
    $region16: #{tpu_custom_call.1} parent=1 // pred_region
      %v106 = vld [vmem:[#allocation5] sm:$0xff]
      %v107 = vmul.f32 %v106, 0.00048828125
      %108 = vst.msk [vmem:[#allocation5] sm:$0xff] %vm101, %v107
    $region17: #{tpu_custom_call.1} parent=1 // pred_fallthru
      _
    // Predicated region
    $region18: #{tpu_custom_call.1} parent=1 // pred_check
      _
    $region19: #{tpu_custom_call.1} parent=1 // pred_check_branch
      %110 = sbr.rel (0) target = $region21
    $region20: #{tpu_custom_call.1} parent=1 // pred_region
      %s112 = ssub.s32 128, 128
      %113 = vsyncadd [#allocation4], %s112
      %s115 = sshll.u32 [#allocation5], 4
      %s116 = int_to_ptr.vmem [resolvable:$true] %s115
      %118 = dma.vmem_to_hbm [thread:$0]  %s116, 128, %s1, [#allocation4]
    $region21: #{tpu_custom_call.1} parent=1 // pred_fallthru
      _
    // Predicated region
    $region22: #{tpu_custom_call.1} parent=1 // pred_check
      _
    $region23: #{tpu_custom_call.1} parent=1 // pred_check_branch
      %120 = sbr.rel (0) target = $region25
    $region24: #{tpu_custom_call.1} parent=1 // pred_region
      %121 = dma.done [#allocation4], 128
    $region25: #{tpu_custom_call.1} parent=1 // pred_fallthru
      _
    %122 = vsyncpa [#allocation3], 1
    %123 = vsyncpa [#allocation4], 1

</llo_original>
